<compile_context>
chip_gen: v6e
topology: v6e:2x2x1
jax: 0.10.0
libtpu: 0.0.40
codegen_flags: <defaults>
</compile_context>

<pallas_src>
import functools

import jax
import jax.numpy as jnp
from jax import lax
from jax.experimental import pallas as pl
from jax.experimental.pallas import tpu as pltpu


def _round_up(v, m):
    return ((v + m - 1) // m) * m


def _vmem_ceiling_bytes():
    # Generation-aware ceiling: leave ~25% of physical VMEM for the compiler.
    # v5e/v6e: 128 MiB physical -> ~96 MiB; v7x: 64 MiB -> ~48 MiB.
    try:
        cap = int(pltpu.get_tpu_info().vmem_capacity_bytes)
        return max(32 << 20, (cap * 3) // 4)
    except Exception:
        return 48 << 20  # safe on every current generation


def mlp_block_actor_kernel(x_ref, w1_ref, b1_ref, g_ref, beta_ref, w2_ref, b2_ref,
                           o_ref, *, eps, true_h):
    # x_ref  : (TB, Dp) f32   streamed / double-buffered across the batch grid
    # w1_ref : (Dp, Hp) bf16  VMEM resident        b1_ref  : (1, Hp) f32
    # g_ref  : (1, Hp)  f32   LN weight (0 in pad) beta_ref: (1, Hp) f32 (0 in pad)
    # w2_ref : (Hp, Hp) bf16  VMEM resident        b2_ref  : (1, Hp) f32
    # o_ref  : (TB, Hp) f32   lane-dense output
    x = x_ref[...]

    # fc1 on the MXU: bf16 inputs, f32 accumulation; bias add in f32 (VPU).
    h = jnp.dot(x.astype(jnp.bfloat16), w1_ref[...],
                preferred_element_type=jnp.float32) + b1_ref[...]

    # LayerNorm over the *true* hidden dim (one-pass statistics).
    # Padded lanes of h are exactly 0 (zero weight columns + zero bias), so
    # sums over Hp equal sums over H; divide by the true H.
    inv_h = jnp.float32(1.0 / true_h)
    s1 = jnp.sum(h, axis=-1, keepdims=True)
    s2 = jnp.sum(h * h, axis=-1, keepdims=True)
    mu = s1 * inv_h
    var = jnp.maximum(s2 * inv_h - mu * mu, 0.0)
    hn = (h - mu) * lax.rsqrt(var + eps)              # rsqrt -> EUP slot (cheap)
    hn = hn * g_ref[...] + beta_ref[...]              # padded lanes -> 0

    # ReLU (f32, VPU), then fc2 on the MXU (bf16 inputs, f32 acc), bias + ReLU.
    a = jnp.maximum(hn, 0.0).astype(jnp.bfloat16)
    h2 = jnp.dot(a, w2_ref[...], preferred_element_type=jnp.float32) + b2_ref[...]
    o_ref[...] = jnp.maximum(h2, 0.0).astype(o_ref.dtype)


def mlp_block_actor(x, w1, b1, gamma, beta, w2, b2, *, block_b=None, eps=1e-5):
    """Forward of MLPBlockActor.

    x:     (B, D) float32
    w1:    (H, D) float32  (PyTorch nn.Linear convention),  b1: (H,)
    gamma: (H,)   float32  (LayerNorm weight),              beta: (H,)
    w2:    (H, H) float32,                                  b2: (H,)
    returns (B, H) float32
    """
    B, D = x.shape
    H = w1.shape[0]

    # ---- host-side layout plumbing (outside the hot path) ----
    # Lane-align contraction dim D and hidden dim H (multiples of 128; bump to
    # 256 on v6e/v7x for very large H if desired).  Padding is zeros, so the
    # matmuls and (masked-by-gamma) LayerNorm are unchanged mathematically.
    Dp = _round_up(max(D, 1), 128)
    Hp = _round_up(max(H, 1), 128)

    w1t = jnp.pad(w1.T.astype(jnp.float32), ((0, Dp - D), (0, Hp - H))).astype(jnp.bfloat16)
    w2t = jnp.pad(w2.T.astype(jnp.float32), ((0, Hp - H), (0, Hp - H))).astype(jnp.bfloat16)
    b1r = jnp.pad(b1.astype(jnp.float32), (0, Hp - H)).reshape(1, Hp)
    b2r = jnp.pad(b2.astype(jnp.float32), (0, Hp - H)).reshape(1, Hp)
    g = jnp.pad(gamma.astype(jnp.float32), (0, Hp - H)).reshape(1, Hp)     # pad gamma with 0
    be = jnp.pad(beta.astype(jnp.float32), (0, Hp - H)).reshape(1, Hp)     # pad beta with 0

    # Batch tile: >= 2 grid steps (so v7x's two TensorCores both get work via
    # the "parallel" grid axis), multiple of 8 sublanes, capped at 512 rows.
    if block_b is None:
        block_b = min(512, max(8, _round_up(pl.cdiv(B, 2), 8)))
    else:
        block_b = max(8, _round_up(int(block_b), 8))
    Bp = _round_up(B, block_b)
    grid = (Bp // block_b,)

    xp = jnp.pad(x.astype(jnp.float32), ((0, Bp - B), (0, Dp - D)))

    # ---- VMEM accounting ----
    # Grid-invariant operands are double-buffered by BlockSpec default -> 2x.
    resident = 2 * ((Dp * Hp + Hp * Hp) * 2 + 4 * Hp * 4)        # bf16 weights + f32 params
    streamed = 2 * (block_b * Dp + block_b * Hp) * 4             # x in / out, double-buffered
    body = block_b * Dp * 2 + 6 * block_b * Hp * 4               # bf16 x copy + intermediates
    estimate = resident + streamed + body + (4 << 20)            # headroom
    vmem_limit = int(min(max(estimate, 32 << 20), _vmem_ceiling_bytes()))
    # TODO(synk): if `estimate` exceeds the ceiling (very large H), add a second
    # grid axis tiling the fc2 output columns instead of keeping (Hp, Hp) W2 resident.

    cost = pl.CostEstimate(
        flops=2 * Bp * Dp * Hp + 2 * Bp * Hp * Hp + 10 * Bp * Hp,
        transcendentals=Bp,  # one rsqrt per row
        bytes_accessed=(Bp * Dp + Bp * Hp + 4 * Hp) * 4 + (Dp * Hp + Hp * Hp) * 2,
    )

    kernel = functools.partial(mlp_block_actor_kernel, eps=eps, true_h=H)

    out = pl.pallas_call(
        kernel,
        out_shape=jax.ShapeDtypeStruct((Bp, Hp), jnp.float32),
        grid_spec=pltpu.PrefetchScalarGridSpec(
            num_scalar_prefetch=0,
            grid=grid,
            in_specs=[
                pl.BlockSpec((block_b, Dp), lambda i: (i, 0)),   # x: streamed
                pl.BlockSpec((Dp, Hp), lambda i: (0, 0)),        # W1^T: resident (bf16)
                pl.BlockSpec((1, Hp), lambda i: (0, 0)),         # b1
                pl.BlockSpec((1, Hp), lambda i: (0, 0)),         # LN gamma
                pl.BlockSpec((1, Hp), lambda i: (0, 0)),         # LN beta
                pl.BlockSpec((Hp, Hp), lambda i: (0, 0)),        # W2^T: resident (bf16)
                pl.BlockSpec((1, Hp), lambda i: (0, 0)),         # b2
            ],
            out_specs=pl.BlockSpec((block_b, Hp), lambda i: (i, 0)),  # lane-dense
        ),
        compiler_params=pltpu.CompilerParams(
            dimension_semantics=("parallel",),
            vmem_limit_bytes=vmem_limit,
        ),
        cost_estimate=cost,
    )(xp, w1t, b1r, g, be, w2t, b2r)

    return out[:B, :H]


def init_params(key, dim, hidden_dim):
    """xavier_uniform_ (gain=1) weights + zero biases, LayerNorm weight=1/bias=0,
    matching weights_init_ and PyTorch defaults."""
    k1, k2 = jax.random.split(key)

    lim1 = jnp.sqrt(6.0 / (dim + hidden_dim))
    w1 = jax.random.uniform(k1, (hidden_dim, dim), jnp.float32, -lim1, lim1)
    b1 = jnp.zeros((hidden_dim,), jnp.float32)

    lim2 = jnp.sqrt(6.0 / (hidden_dim + hidden_dim))
    w2 = jax.random.uniform(k2, (hidden_dim, hidden_dim), jnp.float32, -lim2, lim2)
    b2 = jnp.zeros((hidden_dim,), jnp.float32)

    gamma = jnp.ones((hidden_dim,), jnp.float32)
    beta = jnp.zeros((hidden_dim,), jnp.float32)
    return w1, b1, gamma, beta, w2, b2


def reference(x, w1, b1, gamma, beta, w2, b2, eps=1e-5):
    h = x @ w1.T + b1
    mu = h.mean(axis=-1, keepdims=True)
    var = ((h - mu) ** 2).mean(axis=-1, keepdims=True)
    hn = (h - mu) / jnp.sqrt(var + eps) * gamma + beta
    a = jnp.maximum(hn, 0.0)
    return jnp.maximum(a @ w2.T + b2, 0.0)


if __name__ == "__main__":
    key = jax.random.PRNGKey(0)
    k_p, k_x = jax.random.split(key)

    batch, dim, hidden_dim = 16, 16, 32
    w1, b1, gamma, beta, w2, b2 = init_params(k_p, dim, hidden_dim)
    x = jax.random.normal(k_x, (batch, dim), dtype=jnp.float32)

    # Default block_b gives grid=(2,) even at this demo size (v7x both cores).
    out = mlp_block_actor(x, w1, b1, gamma, beta, w2, b2)
    out = jax.block_until_ready(out)

    ref = reference(x, w1, b1, gamma, beta, w2, b2)
    assert out.shape == (batch, hidden_dim)
    max_err = float(jnp.abs(out - ref).max())
    # bf16 MXU inputs -> looser tolerance vs. the f32 reference.
    assert jnp.allclose(out, ref, atol=5e-2, rtol=5e-2), max_err

    print("KERNEL_OK")
</pallas_src>

<mosaic_0001>
module attributes {stable_mosaic.version = 11 : i64} {
  func.func @mlp_block_actor_kernel(%arg0: i32, %arg1: memref<8x128xf32, #tpu.memory_space<vmem>>, %arg2: memref<128x128xbf16, #tpu.memory_space<vmem>>, %arg3: memref<1x128xf32, #tpu.memory_space<vmem>>, %arg4: memref<1x128xf32, #tpu.memory_space<vmem>>, %arg5: memref<1x128xf32, #tpu.memory_space<vmem>>, %arg6: memref<128x128xbf16, #tpu.memory_space<vmem>>, %arg7: memref<1x128xf32, #tpu.memory_space<vmem>>, %arg8: memref<8x128xf32, #tpu.memory_space<vmem>>) attributes {dimension_semantics = [#tpu.dimension_semantics<parallel>], iteration_bounds = array<i64: 2>, scalar_prefetch = 0 : i64, scratch_operands = 0 : i64, tpu.core_type = #tpu.core_type<tc>, window_params = [{transform_indices = @transform_0, window_bounds = array<i64: 8, 128>}, {pipeline_mode = #tpu.pipeline_mode<synchronous>, transform_indices = @transform_1, window_bounds = array<i64: 128, 128>}, {pipeline_mode = #tpu.pipeline_mode<synchronous>, transform_indices = @transform_2, window_bounds = array<i64: 1, 128>}, {pipeline_mode = #tpu.pipeline_mode<synchronous>, transform_indices = @transform_3, window_bounds = array<i64: 1, 128>}, {pipeline_mode = #tpu.pipeline_mode<synchronous>, transform_indices = @transform_4, window_bounds = array<i64: 1, 128>}, {pipeline_mode = #tpu.pipeline_mode<synchronous>, transform_indices = @transform_5, window_bounds = array<i64: 128, 128>}, {pipeline_mode = #tpu.pipeline_mode<synchronous>, transform_indices = @transform_6, window_bounds = array<i64: 1, 128>}, {transform_indices = @transform_7, window_bounds = array<i64: 8, 128>}]} {
    %c0 = arith.constant 0 : index
    %c0_0 = arith.constant 0 : index
    %0 = vector.load %arg1[%c0, %c0_0] : memref<8x128xf32, #tpu.memory_space<vmem>>, vector<8x128xf32>
    %1 = arith.truncf %0 : vector<8x128xf32> to vector<8x128xbf16>
    %c0_1 = arith.constant 0 : index
    %c0_2 = arith.constant 0 : index
    %2 = vector.load %arg2[%c0_1, %c0_2] : memref<128x128xbf16, #tpu.memory_space<vmem>>, vector<128x128xbf16>
    %cst = arith.constant dense<0.000000e+00> : vector<8x128xf32>
    %3 = tpu.matmul %1, %2, %cst {dimension_numbers = #tpu.dot_dimension_numbers<[1], [0], [0], [1], [0, 0, 1, 1], [], []>} : vector<8x128xbf16>, vector<128x128xbf16>, vector<8x128xf32> -> vector<8x128xf32>
    %c0_3 = arith.constant 0 : index
    %c0_4 = arith.constant 0 : index
    %4 = vector.load %arg3[%c0_3, %c0_4] : memref<1x128xf32, #tpu.memory_space<vmem>>, vector<1x128xf32>
    %5 = vector.broadcast %4 : vector<1x128xf32> to vector<8x128xf32>
    %6 = arith.addf %3, %5 : vector<8x128xf32>
    %cst_5 = arith.constant dense<0.000000e+00> : vector<8xf32>
    %7 = vector.multi_reduction <add>, %6, %cst_5 [1] : vector<8x128xf32> to vector<8xf32>
    %8 = vector.shape_cast %7 : vector<8xf32> to vector<8x1xf32>
    %9 = arith.mulf %6, %6 : vector<8x128xf32>
    %cst_6 = arith.constant dense<0.000000e+00> : vector<8xf32>
    %10 = vector.multi_reduction <add>, %9, %cst_6 [1] : vector<8x128xf32> to vector<8xf32>
    %11 = vector.shape_cast %10 : vector<8xf32> to vector<8x1xf32>
    %cst_7 = arith.constant 3.125000e-02 : f32
    %12 = vector.broadcast %cst_7 : f32 to vector<8x1xf32>
    %13 = arith.mulf %8, %12 : vector<8x1xf32>
    %cst_8 = arith.constant 3.125000e-02 : f32
    %14 = vector.broadcast %cst_8 : f32 to vector<8x1xf32>
    %15 = arith.mulf %11, %14 : vector<8x1xf32>
    %16 = arith.mulf %13, %13 : vector<8x1xf32>
    %17 = arith.subf %15, %16 : vector<8x1xf32>
    %cst_9 = arith.constant 0.000000e+00 : f32
    %18 = vector.broadcast %cst_9 : f32 to vector<8x1xf32>
    %19 = arith.maximumf %17, %18 : vector<8x1xf32>
    %20 = vector.broadcast %13 : vector<8x1xf32> to vector<8x128xf32>
    %21 = arith.subf %6, %20 : vector<8x128xf32>
    %cst_10 = arith.constant 9.99999974E-6 : f32
    %22 = vector.broadcast %cst_10 : f32 to vector<8x1xf32>
    %23 = arith.addf %19, %22 : vector<8x1xf32>
    %24 = math.rsqrt %23 : vector<8x1xf32>
    %25 = vector.broadcast %24 : vector<8x1xf32> to vector<8x128xf32>
    %26 = arith.mulf %21, %25 : vector<8x128xf32>
    %c0_11 = arith.constant 0 : index
    %c0_12 = arith.constant 0 : index
    %27 = vector.load %arg4[%c0_11, %c0_12] : memref<1x128xf32, #tpu.memory_space<vmem>>, vector<1x128xf32>
    %28 = vector.broadcast %27 : vector<1x128xf32> to vector<8x128xf32>
    %29 = arith.mulf %26, %28 : vector<8x128xf32>
    %c0_13 = arith.constant 0 : index
    %c0_14 = arith.constant 0 : index
    %30 = vector.load %arg5[%c0_13, %c0_14] : memref<1x128xf32, #tpu.memory_space<vmem>>, vector<1x128xf32>
    %31 = vector.broadcast %30 : vector<1x128xf32> to vector<8x128xf32>
    %32 = arith.addf %29, %31 : vector<8x128xf32>
    %cst_15 = arith.constant 0.000000e+00 : f32
    %33 = vector.broadcast %cst_15 : f32 to vector<8x128xf32>
    %34 = arith.maximumf %32, %33 : vector<8x128xf32>
    %35 = arith.truncf %34 : vector<8x128xf32> to vector<8x128xbf16>
    %c0_16 = arith.constant 0 : index
    %c0_17 = arith.constant 0 : index
    %36 = vector.load %arg6[%c0_16, %c0_17] : memref<128x128xbf16, #tpu.memory_space<vmem>>, vector<128x128xbf16>
    %cst_18 = arith.constant dense<0.000000e+00> : vector<8x128xf32>
    %37 = tpu.matmul %35, %36, %cst_18 {dimension_numbers = #tpu.dot_dimension_numbers<[1], [0], [0], [1], [0, 0, 1, 1], [], []>} : vector<8x128xbf16>, vector<128x128xbf16>, vector<8x128xf32> -> vector<8x128xf32>
    %c0_19 = arith.constant 0 : index
    %c0_20 = arith.constant 0 : index
    %38 = vector.load %arg7[%c0_19, %c0_20] : memref<1x128xf32, #tpu.memory_space<vmem>>, vector<1x128xf32>
    %39 = vector.broadcast %38 : vector<1x128xf32> to vector<8x128xf32>
    %40 = arith.addf %37, %39 : vector<8x128xf32>
    %cst_21 = arith.constant 0.000000e+00 : f32
    %41 = vector.broadcast %cst_21 : f32 to vector<8x128xf32>
    %42 = arith.maximumf %40, %41 : vector<8x128xf32>
    %c0_22 = arith.constant 0 : index
    %c0_23 = arith.constant 0 : index
    %43 = vector.load %arg8[%c0_22, %c0_23] : memref<8x128xf32, #tpu.memory_space<vmem>>, vector<8x128xf32>
    tpu.vector_store %arg8[%c0_22, %c0_23], %42 {strides = array<i32>} : memref<8x128xf32, #tpu.memory_space<vmem>>, vector<8x128xf32>,
    return
  }
  func.func @transform_0(%arg0: i32) -> (i32, i32) {
    %c0_i32 = arith.constant 0 : i32
    %c0_i32_0 = arith.constant 0 : i32
    return %arg0, %c0_i32 : i32, i32
  }
  func.func @transform_1(%arg0: i32) -> (i32, i32) {
    %c0_i32 = arith.constant 0 : i32
    %c0_i32_0 = arith.constant 0 : i32
    %c0_i32_1 = arith.constant 0 : i32
    return %c0_i32, %c0_i32_0 : i32, i32
  }
  func.func @transform_2(%arg0: i32) -> (i32, i32) {
    %c0_i32 = arith.constant 0 : i32
    %c0_i32_0 = arith.constant 0 : i32
    %c0_i32_1 = arith.constant 0 : i32
    return %c0_i32, %c0_i32_0 : i32, i32
  }
  func.func @transform_3(%arg0: i32) -> (i32, i32) {
    %c0_i32 = arith.constant 0 : i32
    %c0_i32_0 = arith.constant 0 : i32
    %c0_i32_1 = arith.constant 0 : i32
    return %c0_i32, %c0_i32_0 : i32, i32
  }
  func.func @transform_4(%arg0: i32) -> (i32, i32) {
    %c0_i32 = arith.constant 0 : i32
    %c0_i32_0 = arith.constant 0 : i32
    %c0_i32_1 = arith.constant 0 : i32
    return %c0_i32, %c0_i32_0 : i32, i32
  }
  func.func @transform_5(%arg0: i32) -> (i32, i32) {
    %c0_i32 = arith.constant 0 : i32
    %c0_i32_0 = arith.constant 0 : i32
    %c0_i32_1 = arith.constant 0 : i32
    return %c0_i32, %c0_i32_0 : i32, i32
  }
  func.func @transform_6(%arg0: i32) -> (i32, i32) {
    %c0_i32 = arith.constant 0 : i32
    %c0_i32_0 = arith.constant 0 : i32
    %c0_i32_1 = arith.constant 0 : i32
    return %c0_i32, %c0_i32_0 : i32, i32
  }
  func.func @transform_7(%arg0: i32) -> (i32, i32) {
    %c0_i32 = arith.constant 0 : i32
    %c0_i32_0 = arith.constant 0 : i32
    return %arg0, %c0_i32 : i32, i32
  }
}

</mosaic_0001>

<llo_original>
// kernel: tpu_custom_call.1
$region0: #{tpu_custom_call.1}
  #allocation0 [shape = 'u32[]', space=smem, size = 0x4, offset = 0x4, fixed_abs, tag = 'smem constant byte address 0x4 - core index']
  #allocation1 [shape = 'u32[144,128]{1,0:T(1,128)}', space=vmem, size = 0x12000, scoped, tag = 'internal scratch']
  %s0 = inlined_call_operand.hbm [shape: f32[16,128], index: 0, kind: input, shape index: {}]
  %s1 = inlined_call_operand.hbm [shape: bf16[128,128], index: 1, kind: input, shape index: {}]
  %s2 = inlined_call_operand.vmem [shape: f32[1,128], index: 2, kind: input, shape index: {}]
  %s3 = inlined_call_operand.vmem [shape: f32[1,128], index: 3, kind: input, shape index: {}]
  %s4 = inlined_call_operand.vmem [shape: f32[1,128], index: 4, kind: input, shape index: {}]
  %s5 = inlined_call_operand.hbm [shape: bf16[128,128], index: 5, kind: input, shape index: {}]
  %s6 = inlined_call_operand.vmem [shape: f32[1,128], index: 6, kind: input, shape index: {}]
  %s7 = inlined_call_operand.hbm [shape: f32[16,128], index: 7, kind: output, shape index: {}]
  %s8 = sld [smem:[#allocation0]]
  $region73: #{tpu_custom_call.1} parent=0
    _
  %s10 = ssub.s32 1, %s8
  %s11 = scalar_select 0, %s10, %s8
  $region1: #{tpu_custom_call.1} parent=0
    #allocation2 [shape = 'u8[8192]{0}', space=vmem, size = 0x2000, scoped, tag = 'input window, operand 0']
    #allocation3 [shape = 's32[2]{0}', space=sflag, size = 0x8, scoped, tag = 'scoped memory for tpu_custom_call.1']
    #allocation4 [shape = 's32[2]{0}', space=sflag, size = 0x8, scoped, tag = 'scoped memory for tpu_custom_call.1']
    #allocation5 [shape = 'u8[32768]{0}', space=vmem, size = 0x8000, scoped, tag = 'input window, operand 1, single buffered']
    #allocation6 [shape = 's32[1]{0}', space=sflag, size = 0x4, scoped, tag = 'scoped memory for tpu_custom_call.1']
    #allocation7 [shape = 'u8[32768]{0}', space=vmem, size = 0x8000, scoped, tag = 'input window, operand 5, single buffered']
    #allocation8 [shape = 'u8[8192]{0}', space=vmem, size = 0x2000, scoped, tag = 'output window, operand 0']
    %12 = vsyncpa [#allocation3], 0
    %s13 = scalar_lea.sflag [#allocation3], 1
    %14 = vsyncpa %s13, 0
    %15 = vsyncpa [#allocation6], 0
    %16 = vsyncpa [#allocation4], 0
    %s17 = scalar_lea.sflag [#allocation4], 1
    %18 = vsyncpa %s17, 0
    loop: start=0, step=1, limit=4
    $region2: #{tpu_custom_call.1} parent=1 // loop_pre_header
      _
    $region3: #{tpu_custom_call.1} parent=1 // loop_header
      %s20 = sphi 0, %s24
      %p21 = scmp.ge.s32.totalorder %s20, 4
      %s30 = sphi 0, %s32
      %s33 = sphi 0, %s30
      %s34 = sphi 0, %s33
      %s50 = sphi 0, %s34
      %s54 = sphi 0, %s54
      %s56 = sphi 0, %s54
      %s57 = sphi 0, %s56
      %s71 = sphi 0, %s57
      %s75 = sphi 0, %s75
      %s77 = sphi 0, %s75
      %s78 = sphi 0, %s77
      %s92 = sphi 0, %s78
      %s96 = sphi 0, %s96
      %s98 = sphi 0, %s96
      %s99 = sphi 0, %s98
      %s113 = sphi 0, %s99
      %s117 = sphi 0, %s117
      %s119 = sphi 0, %s117
      %s120 = sphi 0, %s119
      %s134 = sphi 0, %s120
      %s138 = sphi 0, %s138
      %s140 = sphi 0, %s138
      %s141 = sphi 0, %s140
      %s155 = sphi 0, %s141
      %s159 = sphi 0, %s159
      %s161 = sphi 0, %s159
      %s162 = sphi 0, %s161
      %s176 = sphi 0, %s162
      %s182 = sphi 0, %s184
      %s185 = sphi 0, %s182
      %s186 = sphi 0, %s185
      %s202 = sphi 0, %s186
    $region4: #{tpu_custom_call.1} parent=1 // loop_header_branch
      %23 = sbr.rel (%p21) target = $region8
    $region5: #{tpu_custom_call.1} parent=1 // loop_body
      %s25 = ssub.s32 %s20, 1
      %s26 = ssub.s32 %s20, 2
      %s27 = sadd.s32 %s20, 1
      %s28 = ssub.s32 %s20, %s27
      %p29 = scmp.eq.s32.totalorder %s28, 0
      %s31 = sadd.s32 %s30, 1
      %s32 = scalar_select %p29, %s30, %s31
      %p35 = pneg %p29
      %p36 = scmp.eq.s32.totalorder %s20, 1
      %p37 = por %p35, %p36
      %p38 = scmp.ne.s32.totalorder %s30, %s33
      %p39 = scmp.eq.s32.totalorder %s20, 0
      %p40 = por %p38, %p39
      %p41 = scmp.ne.s32.totalorder %s30, %s33
      %p42 = scmp.eq.s32.totalorder %s25, 1
      %p43 = por %p41, %p42
      %p44 = scmp.ne.s32.totalorder %s33, %s34
      %p45 = scmp.eq.s32.totalorder %s25, 0
      %p46 = por %p44, %p45
      %p47 = scmp.ne.s32.totalorder %s33, %s34
      %p48 = scmp.eq.s32.totalorder %s26, 1
      %p49 = por %p47, %p48
      %p51 = scmp.ne.s32.totalorder %s34, %s50
      %p52 = scmp.eq.s32.totalorder %s26, 0
      %p53 = por %p51, %p52
      %s55 = sadd.s32 %s54, 1
      %p58 = scmp.eq.s32.totalorder %s20, 1
      %p59 = scmp.ne.s32.totalorder %s54, %s56
      %p60 = scmp.eq.s32.totalorder %s20, 0
      %p61 = por %p59, %p60
      %p62 = scmp.ne.s32.totalorder %s54, %s56
      %p63 = scmp.eq.s32.totalorder %s25, 1
      %p64 = por %p62, %p63
      %p65 = scmp.ne.s32.totalorder %s56, %s57
      %p66 = scmp.eq.s32.totalorder %s25, 0
      %p67 = por %p65, %p66
      %p68 = scmp.ne.s32.totalorder %s56, %s57
      %p69 = scmp.eq.s32.totalorder %s26, 1
      %p70 = por %p68, %p69
      %p72 = scmp.ne.s32.totalorder %s57, %s71
      %p73 = scmp.eq.s32.totalorder %s26, 0
      %p74 = por %p72, %p73
      %s76 = sadd.s32 %s75, 1
      %p79 = scmp.eq.s32.totalorder %s20, 1
      %p80 = scmp.ne.s32.totalorder %s75, %s77
      %p81 = scmp.eq.s32.totalorder %s20, 0
      %p82 = por %p80, %p81
      %p83 = scmp.ne.s32.totalorder %s75, %s77
      %p84 = scmp.eq.s32.totalorder %s25, 1
      %p85 = por %p83, %p84
      %p86 = scmp.ne.s32.totalorder %s77, %s78
      %p87 = scmp.eq.s32.totalorder %s25, 0
      %p88 = por %p86, %p87
      %p89 = scmp.ne.s32.totalorder %s77, %s78
      %p90 = scmp.eq.s32.totalorder %s26, 1
      %p91 = por %p89, %p90
      %p93 = scmp.ne.s32.totalorder %s78, %s92
      %p94 = scmp.eq.s32.totalorder %s26, 0
      %p95 = por %p93, %p94
      %s97 = sadd.s32 %s96, 1
      %p100 = scmp.eq.s32.totalorder %s20, 1
      %p101 = scmp.ne.s32.totalorder %s96, %s98
      %p102 = scmp.eq.s32.totalorder %s20, 0
      %p103 = por %p101, %p102
      %p104 = scmp.ne.s32.totalorder %s96, %s98
      %p105 = scmp.eq.s32.totalorder %s25, 1
      %p106 = por %p104, %p105
      %p107 = scmp.ne.s32.totalorder %s98, %s99
      %p108 = scmp.eq.s32.totalorder %s25, 0
      %p109 = por %p107, %p108
      %p110 = scmp.ne.s32.totalorder %s98, %s99
      %p111 = scmp.eq.s32.totalorder %s26, 1
      %p112 = por %p110, %p111
      %p114 = scmp.ne.s32.totalorder %s99, %s113
      %p115 = scmp.eq.s32.totalorder %s26, 0
      %p116 = por %p114, %p115
      %s118 = sadd.s32 %s117, 1
      %p121 = scmp.eq.s32.totalorder %s20, 1
      %p122 = scmp.ne.s32.totalorder %s117, %s119
      %p123 = scmp.eq.s32.totalorder %s20, 0
      %p124 = por %p122, %p123
      %p125 = scmp.ne.s32.totalorder %s117, %s119
      %p126 = scmp.eq.s32.totalorder %s25, 1
      %p127 = por %p125, %p126
      %p128 = scmp.ne.s32.totalorder %s119, %s120
      %p129 = scmp.eq.s32.totalorder %s25, 0
      %p130 = por %p128, %p129
      %p131 = scmp.ne.s32.totalorder %s119, %s120
      %p132 = scmp.eq.s32.totalorder %s26, 1
      %p133 = por %p131, %p132
      %p135 = scmp.ne.s32.totalorder %s120, %s134
      %p136 = scmp.eq.s32.totalorder %s26, 0
      %p137 = por %p135, %p136
      %s139 = sadd.s32 %s138, 1
      %p142 = scmp.eq.s32.totalorder %s20, 1
      %p143 = scmp.ne.s32.totalorder %s138, %s140
      %p144 = scmp.eq.s32.totalorder %s20, 0
      %p145 = por %p143, %p144
      %p146 = scmp.ne.s32.totalorder %s138, %s140
      %p147 = scmp.eq.s32.totalorder %s25, 1
      %p148 = por %p146, %p147
      %p149 = scmp.ne.s32.totalorder %s140, %s141
      %p150 = scmp.eq.s32.totalorder %s25, 0
      %p151 = por %p149, %p150
      %p152 = scmp.ne.s32.totalorder %s140, %s141
      %p153 = scmp.eq.s32.totalorder %s26, 1
      %p154 = por %p152, %p153
      %p156 = scmp.ne.s32.totalorder %s141, %s155
      %p157 = scmp.eq.s32.totalorder %s26, 0
      %p158 = por %p156, %p157
      %s160 = sadd.s32 %s159, 1
      %p163 = scmp.eq.s32.totalorder %s20, 1
      %p164 = scmp.ne.s32.totalorder %s159, %s161
      %p165 = scmp.eq.s32.totalorder %s20, 0
      %p166 = por %p164, %p165
      %p167 = scmp.ne.s32.totalorder %s159, %s161
      %p168 = scmp.eq.s32.totalorder %s25, 1
      %p169 = por %p167, %p168
      %p170 = scmp.ne.s32.totalorder %s161, %s162
      %p171 = scmp.eq.s32.totalorder %s25, 0
      %p172 = por %p170, %p171
      %p173 = scmp.ne.s32.totalorder %s161, %s162
      %p174 = scmp.eq.s32.totalorder %s26, 1
      %p175 = por %p173, %p174
      %p177 = scmp.ne.s32.totalorder %s162, %s176
      %p178 = scmp.eq.s32.totalorder %s26, 0
      %p179 = por %p177, %p178
      %s180 = ssub.s32 %s20, %s27
      %p181 = scmp.eq.s32.totalorder %s180, 0
      %s183 = sadd.s32 %s182, 1
      %s184 = scalar_select %p181, %s182, %s183
      %p187 = pneg %p181
      %p188 = scmp.eq.s32.totalorder %s20, 1
      %p189 = por %p187, %p188
      %p190 = scmp.ne.s32.totalorder %s182, %s185
      %p191 = scmp.eq.s32.totalorder %s20, 0
      %p192 = por %p190, %p191
      %p193 = scmp.ne.s32.totalorder %s182, %s185
      %p194 = scmp.eq.s32.totalorder %s25, 1
      %p195 = por %p193, %p194
      %p196 = scmp.ne.s32.totalorder %s185, %s186
      %p197 = scmp.eq.s32.totalorder %s25, 0
      %p198 = por %p196, %p197
      %p199 = scmp.ne.s32.totalorder %s185, %s186
      %p200 = scmp.eq.s32.totalorder %s26, 1
      %p201 = por %p199, %p200
      %p203 = scmp.ne.s32.totalorder %s186, %s202
      %p204 = scmp.eq.s32.totalorder %s26, 0
      %p205 = por %p203, %p204
      %p206 = scmp.le.s32.totalorder 1, %s20
      %p207 = scmp.lt.s32.totalorder %s20, 3
      %p208 = pnand %p206, %p207
      %p209 = pneg %p208
      // Predicated region
      $region9: #{tpu_custom_call.1} parent=5 // pred_check
        _
      $region10: #{tpu_custom_call.1} parent=5 // pred_check_branch
        %211 = sbr.rel (%p208) target = $region12
      $region11: #{tpu_custom_call.1} parent=5 // pred_region
        %s212 = ssub.s32 %s20, 1
        // Predicated region
        $region13: #{tpu_custom_call.1} parent=11 // pred_check
          %p213 = pneg %p67
        $region14: #{tpu_custom_call.1} parent=11 // pred_check_branch
          %215 = sbr.rel (%p213) target = $region16
        $region15: #{tpu_custom_call.1} parent=11 // pred_region
          %s217 = ssub.s32 1024, 1024
          %218 = vsyncadd [#allocation6], %s217
          %s219 = sshll.u32 [#allocation5], 4
          %s220 = int_to_ptr.vmem [resolvable:$true] %s219
          %225 = dma.hbm_to_vmem [thread:$0]  %s1, 1024, %s220, [#allocation6], 64, 64, 4
        $region16: #{tpu_custom_call.1} parent=11 // pred_fallthru
          _
        // Predicated region
        $region17: #{tpu_custom_call.1} parent=11 // pred_check
          %p226 = pneg %p88
        $region18: #{tpu_custom_call.1} parent=11 // pred_check_branch
          %228 = sbr.rel (%p226) target = $region20
        $region19: #{tpu_custom_call.1} parent=11 // pred_region
          _
        $region20: #{tpu_custom_call.1} parent=11 // pred_fallthru
          _
        // Predicated region
        $region21: #{tpu_custom_call.1} parent=11 // pred_check
          %p229 = pneg %p109
        $region22: #{tpu_custom_call.1} parent=11 // pred_check_branch
          %231 = sbr.rel (%p229) target = $region24
        $region23: #{tpu_custom_call.1} parent=11 // pred_region
          _
        $region24: #{tpu_custom_call.1} parent=11 // pred_fallthru
          _
        // Predicated region
        $region25: #{tpu_custom_call.1} parent=11 // pred_check
          %p232 = pneg %p130
        $region26: #{tpu_custom_call.1} parent=11 // pred_check_branch
          %234 = sbr.rel (%p232) target = $region28
        $region27: #{tpu_custom_call.1} parent=11 // pred_region
          _
        $region28: #{tpu_custom_call.1} parent=11 // pred_fallthru
          _
        // Predicated region
        $region29: #{tpu_custom_call.1} parent=11 // pred_check
          %p235 = pneg %p151
        $region30: #{tpu_custom_call.1} parent=11 // pred_check_branch
          %237 = sbr.rel (%p235) target = $region32
        $region31: #{tpu_custom_call.1} parent=11 // pred_region
          %s239 = ssub.s32 1024, 1024
          %240 = vsyncadd [#allocation6], %s239
          %s241 = sshll.u32 [#allocation7], 4
          %s242 = int_to_ptr.vmem [resolvable:$true] %s241
          %247 = dma.hbm_to_vmem [thread:$0]  %s5, 1024, %s242, [#allocation6], 64, 64, 4
        $region32: #{tpu_custom_call.1} parent=11 // pred_fallthru
          _
        // Predicated region
        $region33: #{tpu_custom_call.1} parent=11 // pred_check
          %p248 = pneg %p172
        $region34: #{tpu_custom_call.1} parent=11 // pred_check_branch
          %250 = sbr.rel (%p248) target = $region36
        $region35: #{tpu_custom_call.1} parent=11 // pred_region
          _
        $region36: #{tpu_custom_call.1} parent=11 // pred_fallthru
          _
      $region12: #{tpu_custom_call.1} parent=5 // pred_fallthru
        _
      %p251 = scmp.lt.s32.totalorder %s20, 2
      // Predicated region
      $region37: #{tpu_custom_call.1} parent=5 // pred_check
        %p252 = pneg %p251
      $region38: #{tpu_custom_call.1} parent=5 // pred_check_branch
        %254 = sbr.rel (%p252) target = $region40
      $region39: #{tpu_custom_call.1} parent=5 // pred_region
        // Predicated region
        $region41: #{tpu_custom_call.1} parent=39 // pred_check
          %p255 = pneg %p40
        $region42: #{tpu_custom_call.1} parent=39 // pred_check_branch
          %257 = sbr.rel (%p255) target = $region44
        $region43: #{tpu_custom_call.1} parent=39 // pred_region
          %s258 = sand.u32 %s30, 1
          %s259 = scalar_lea.sflag [#allocation3], %s258
          %s260 = sand.u32 %s30, 1
          %s261 = smul.addr %s260, 8
          %s262 = scalar_lea.vmem [#allocation2], %s261
          %s264 = ssub.s32 128, 128
          %265 = vsyncadd %s259, %s264
          %s266 = smul.addr %s20, 128
          %s267 = scalar_lea.hbm %s0, %s266
          %s269 = sshll.u32 %s262, 4
          %s270 = int_to_ptr.vmem [resolvable:$true] %s269
          %272 = dma.hbm_to_vmem [thread:$0]  %s267, 128, %s270, %s259
        $region44: #{tpu_custom_call.1} parent=39 // pred_fallthru
          _
      $region40: #{tpu_custom_call.1} parent=5 // pred_fallthru
        _
      %p273 = scmp.le.s32.totalorder 1, %s20
      %p274 = scmp.lt.s32.totalorder %s20, 3
      %p275 = pnand %p273, %p274
      %p276 = pneg %p275
      // Predicated region
      $region45: #{tpu_custom_call.1} parent=5 // pred_check
        _
      $region46: #{tpu_custom_call.1} parent=5 // pred_check_branch
        %278 = sbr.rel (%p275) target = $region48
      $region47: #{tpu_custom_call.1} parent=5 // pred_region
        %s279 = ssub.s32 %s20, 1
        %s280 = sand.u32 %s33, 1
        %s281 = scalar_lea.sflag [#allocation3], %s280
        %s282 = sand.u32 %s33, 1
        %s283 = smul.addr %s282, 8
        %s284 = scalar_lea.vmem [#allocation2], %s283
        // Predicated region
        $region49: #{tpu_custom_call.1} parent=47 // pred_check
          %p285 = pneg %p46
        $region50: #{tpu_custom_call.1} parent=47 // pred_check_branch
          %287 = sbr.rel (%p285) target = $region52
        $region51: #{tpu_custom_call.1} parent=47 // pred_region
          %288 = dma.done %s281, 128
        $region52: #{tpu_custom_call.1} parent=47 // pred_fallthru
          _
        // Predicated region
        $region53: #{tpu_custom_call.1} parent=47 // pred_check
          %p289 = pneg %p67
        $region54: #{tpu_custom_call.1} parent=47 // pred_check_branch
          %291 = sbr.rel (%p289) target = $region56
        $region55: #{tpu_custom_call.1} parent=47 // pred_region
          %292 = dma.done [#allocation6], 1024
        $region56: #{tpu_custom_call.1} parent=47 // pred_fallthru
          _
        // Predicated region
        $region57: #{tpu_custom_call.1} parent=47 // pred_check
          %p293 = pneg %p151
        $region58: #{tpu_custom_call.1} parent=47 // pred_check_branch
          %295 = sbr.rel (%p293) target = $region60
        $region59: #{tpu_custom_call.1} parent=47 // pred_region
          %296 = dma.done [#allocation6], 1024
        $region60: #{tpu_custom_call.1} parent=47 // pred_fallthru
          _
        %s297 = sand.u32 %s33, 1
        %s298 = scalar_lea.sflag [#allocation3], %s297
        %s299 = sand.u32 %s33, 1
        %s300 = smul.addr %s299, 8
        %s301 = scalar_lea.vmem [#allocation2], %s300
        %p302 = pneg %p46
        %p303 = pneg %p43
        %p304 = pneg %p67
        %p305 = pneg %p64
        %p306 = pneg %p88
        %p307 = pneg %p85
        %p308 = pneg %p109
        %p309 = pneg %p106
        %p310 = pneg %p130
        %p311 = pneg %p127
        %p312 = pneg %p151
        %p313 = pneg %p148
        %p314 = pneg %p172
        %p315 = pneg %p169
        %p316 = pneg %p198
        %p317 = pneg %p195
        %s318 = sand.u32 %s185, 1
        %s319 = scalar_lea.sflag [#allocation4], %s318
        %s320 = sand.u32 %s185, 1
        %s321 = smul.addr %s320, 8
        %s322 = scalar_lea.vmem [#allocation8], %s321
        %v324 = vld [vmem:[%s284] sm:$0xff]
        %v325 = vpack.c.bf16 %v324, %v324
        %v326 = vld [vmem:[#allocation5] sm:$0xf]
        %v327 = vld [vmem:[#allocation5 + $0x4] sm:$0xf]
        %v328 = vld [vmem:[#allocation5 + $0x8] sm:$0xf]
        %v329 = vld [vmem:[#allocation5 + $0xc] sm:$0xf]
        %v330 = vld [vmem:[#allocation5 + $0x10] sm:$0xf]
        %v331 = vld [vmem:[#allocation5 + $0x14] sm:$0xf]
        %v332 = vld [vmem:[#allocation5 + $0x18] sm:$0xf]
        %v333 = vld [vmem:[#allocation5 + $0x1c] sm:$0xf]
        %v334 = vld [vmem:[#allocation5 + $0x20] sm:$0xf]
        %v335 = vld [vmem:[#allocation5 + $0x24] sm:$0xf]
        %v336 = vld [vmem:[#allocation5 + $0x28] sm:$0xf]
        %v337 = vld [vmem:[#allocation5 + $0x2c] sm:$0xf]
        %v338 = vld [vmem:[#allocation5 + $0x30] sm:$0xf]
        %v339 = vld [vmem:[#allocation5 + $0x34] sm:$0xf]
        %v340 = vld [vmem:[#allocation5 + $0x38] sm:$0xf]
        %v341 = vld [vmem:[#allocation5 + $0x3c] sm:$0xf]
        %v342 = vld [vmem:[%s2] sm:$0x1]
        %v344 = vlaneseq
        %v345 = vshrl.u32 %v344, 7
        %v346 = vsub.s32 0, %v345
        %v347 = vrot.slane %v342, %v346
        %v365 = vunpack.c.l.b16 %v326
        %v366 = vunpack.c.l.b16 %v327
        %v367 = vunpack.c.l.b16 %v328
        %v368 = vunpack.c.l.b16 %v329
        %v369 = vunpack.c.l.b16 %v330
        %v370 = vunpack.c.l.b16 %v331
        %v371 = vunpack.c.l.b16 %v332
        %v372 = vunpack.c.l.b16 %v333
        %v373 = vunpack.c.l.b16 %v334
        %v374 = vunpack.c.l.b16 %v335
        %v375 = vunpack.c.l.b16 %v336
        %v376 = vunpack.c.l.b16 %v337
        %v377 = vunpack.c.l.b16 %v338
        %v378 = vunpack.c.l.b16 %v339
        %v379 = vunpack.c.l.b16 %v340
        %v380 = vunpack.c.l.b16 %v341
        %v381 = vpack.c.b16 %v366, %v365
        %v382 = vpack.c.b16 %v368, %v367
        %v383 = vpack.c.b16 %v370, %v369
        %v384 = vpack.c.b16 %v372, %v371
        %v385 = vpack.c.b16 %v374, %v373
        %v386 = vpack.c.b16 %v376, %v375
        %v387 = vpack.c.b16 %v378, %v377
        %v388 = vpack.c.b16 %v380, %v379
        %397 = vmatprep.subr.bf16.mxu0 0
        %398 = vmatpush1.bf16.msra.mxu0 %v388
        %399 = vmatprep.subr.bf16.mxu0 0
        %400 = vmatpush1.bf16.msra.mxu0 %v387
        %401 = vmatprep.subr.bf16.mxu0 0
        %402 = vmatpush1.bf16.msra.mxu0 %v386
        %403 = vmatprep.subr.bf16.mxu0 0
        %404 = vmatpush1.bf16.msra.mxu0 %v385
        %405 = vmatprep.subr.bf16.mxu0 0
        %406 = vmatpush1.bf16.msra.mxu0 %v384
        %407 = vmatprep.subr.bf16.mxu0 0
        %408 = vmatpush1.bf16.msra.mxu0 %v383
        %409 = vmatprep.subr.bf16.mxu0 0
        %410 = vmatpush1.bf16.msra.mxu0 %v382
        %411 = vmatprep.subr.bf16.mxu0 0
        %412 = vmatpush1.bf16.msra.mxu0 %v381
        %413 = vmatprep.subr.bf16.mxu0 0
        %414 = vmatpush2.bf16.msra.mxu0 0
        %415 = vmatprep.subr.bf16.mxu0 0
        %416 = vmatpush2.bf16.msra.mxu0 0
        %417 = vmatprep.subr.bf16.mxu0 0
        %418 = vmatpush2.bf16.msra.mxu0 0
        %419 = vmatprep.subr.bf16.mxu0 0
        %420 = vmatpush2.bf16.msra.mxu0 0
        %421 = vmatprep.subr.bf16.mxu0 0
        %422 = vmatpush2.bf16.msra.mxu0 0
        %423 = vmatprep.subr.bf16.mxu0 0
        %424 = vmatpush2.bf16.msra.mxu0 0
        %425 = vmatprep.subr.bf16.mxu0 0
        %426 = vmatpush2.bf16.msra.mxu0 0
        %427 = vmatprep.subr.bf16.mxu0 0
        %428 = vmatpush2.bf16.msra.mxu0 0
        %429 = vmatprep.mubr.bf16.mxu0 0
        %430 = vmatmul.mubr.bf16.gmra.mxu0 %v325
        %v431 = vpop.f32.mrf.mxu0
        %v432 = vadd.f32 %v347, %v431
        %v433 = vpop.f32.mrf.mxu0
        %v434 = vpop.f32.mrf.mxu0
        %v435 = vpop.f32.mrf.mxu0
        %436 = vdwg.mxu0
        %437 = vadd.xlane.f32.xlu0 %v432
        %v438 = vpop.xlane.xlu0 %437
        %v439 = vmul.f32 %v432, %v432
        %440 = vadd.xlane.f32.xlu0 %v439
        %v441 = vpop.xlane.xlu0 %440
        %v442 = vmul.f32 %v438, 0.03125
        %v443 = vmul.f32 %v441, 0.03125
        %v444 = vmul.f32 %v442, %v442
        %v445 = vsub.f32 %v443, %v444
        %v446 = vmax.f32 %v445, 0.0
        %v447 = vsub.f32 %v432, %v442
        %v448 = vadd.f32 %v446, 1e-05
        %v449 = vrsqrt.pop %v448
        %v450 = vmul.f32 %v447, %v449
        %v451 = vld [vmem:[%s3] sm:$0x1]
        %v453 = vlaneseq
        %v454 = vshrl.u32 %v453, 7
        %v455 = vsub.s32 0, %v454
        %v456 = vrot.slane %v451, %v455
        %v458 = vmul.f32 %v450, %v456
        %v459 = vld [vmem:[%s4] sm:$0x1]
        %v461 = vlaneseq
        %v462 = vshrl.u32 %v461, 7
        %v463 = vsub.s32 0, %v462
        %v464 = vrot.slane %v459, %v463
        %v466 = vadd.f32 %v458, %v464
        %v467 = vmax.f32 %v466, 0.0
        %v468 = vpack.c.bf16 %v467, %v467
        %v469 = vld [vmem:[#allocation7] sm:$0xf]
        %v470 = vld [vmem:[#allocation7 + $0x4] sm:$0xf]
        %v471 = vld [vmem:[#allocation7 + $0x8] sm:$0xf]
        %v472 = vld [vmem:[#allocation7 + $0xc] sm:$0xf]
        %v473 = vld [vmem:[#allocation7 + $0x10] sm:$0xf]
        %v474 = vld [vmem:[#allocation7 + $0x14] sm:$0xf]
        %v475 = vld [vmem:[#allocation7 + $0x18] sm:$0xf]
        %v476 = vld [vmem:[#allocation7 + $0x1c] sm:$0xf]
        %v477 = vld [vmem:[#allocation7 + $0x20] sm:$0xf]
        %v478 = vld [vmem:[#allocation7 + $0x24] sm:$0xf]
        %v479 = vld [vmem:[#allocation7 + $0x28] sm:$0xf]
        %v480 = vld [vmem:[#allocation7 + $0x2c] sm:$0xf]
        %v481 = vld [vmem:[#allocation7 + $0x30] sm:$0xf]
        %v482 = vld [vmem:[#allocation7 + $0x34] sm:$0xf]
        %v483 = vld [vmem:[#allocation7 + $0x38] sm:$0xf]
        %v484 = vld [vmem:[#allocation7 + $0x3c] sm:$0xf]
        %v485 = vld [vmem:[%s6] sm:$0x1]
        %v487 = vlaneseq
        %v488 = vshrl.u32 %v487, 7
        %v489 = vsub.s32 0, %v488
        %v490 = vrot.slane %v485, %v489
        %v508 = vunpack.c.l.b16 %v469
        %v509 = vunpack.c.l.b16 %v470
        %v510 = vunpack.c.l.b16 %v471
        %v511 = vunpack.c.l.b16 %v472
        %v512 = vunpack.c.l.b16 %v473
        %v513 = vunpack.c.l.b16 %v474
        %v514 = vunpack.c.l.b16 %v475
        %v515 = vunpack.c.l.b16 %v476
        %v516 = vunpack.c.l.b16 %v477
        %v517 = vunpack.c.l.b16 %v478
        %v518 = vunpack.c.l.b16 %v479
        %v519 = vunpack.c.l.b16 %v480
        %v520 = vunpack.c.l.b16 %v481
        %v521 = vunpack.c.l.b16 %v482
        %v522 = vunpack.c.l.b16 %v483
        %v523 = vunpack.c.l.b16 %v484
        %v524 = vpack.c.b16 %v509, %v508
        %v525 = vpack.c.b16 %v511, %v510
        %v526 = vpack.c.b16 %v513, %v512
        %v527 = vpack.c.b16 %v515, %v514
        %v528 = vpack.c.b16 %v517, %v516
        %v529 = vpack.c.b16 %v519, %v518
        %v530 = vpack.c.b16 %v521, %v520
        %v531 = vpack.c.b16 %v523, %v522
        %540 = vmatprep.subr.bf16.mxu0 0
        %541 = vmatpush1.bf16.msra.mxu0 %v531
        %542 = vmatprep.subr.bf16.mxu0 0
        %543 = vmatpush1.bf16.msra.mxu0 %v530
        %544 = vmatprep.subr.bf16.mxu0 0
        %545 = vmatpush1.bf16.msra.mxu0 %v529
        %546 = vmatprep.subr.bf16.mxu0 0
        %547 = vmatpush1.bf16.msra.mxu0 %v528
        %548 = vmatprep.subr.bf16.mxu0 0
        %549 = vmatpush1.bf16.msra.mxu0 %v527
        %550 = vmatprep.subr.bf16.mxu0 0
        %551 = vmatpush1.bf16.msra.mxu0 %v526
        %552 = vmatprep.subr.bf16.mxu0 0
        %553 = vmatpush1.bf16.msra.mxu0 %v525
        %554 = vmatprep.subr.bf16.mxu0 0
        %555 = vmatpush1.bf16.msra.mxu0 %v524
        %556 = vmatprep.subr.bf16.mxu0 0
        %557 = vmatpush2.bf16.msra.mxu0 0
        %558 = vmatprep.subr.bf16.mxu0 0
        %559 = vmatpush2.bf16.msra.mxu0 0
        %560 = vmatprep.subr.bf16.mxu0 0
        %561 = vmatpush2.bf16.msra.mxu0 0
        %562 = vmatprep.subr.bf16.mxu0 0
        %563 = vmatpush2.bf16.msra.mxu0 0
        %564 = vmatprep.subr.bf16.mxu0 0
        %565 = vmatpush2.bf16.msra.mxu0 0
        %566 = vmatprep.subr.bf16.mxu0 0
        %567 = vmatpush2.bf16.msra.mxu0 0
        %568 = vmatprep.subr.bf16.mxu0 0
        %569 = vmatpush2.bf16.msra.mxu0 0
        %570 = vmatprep.subr.bf16.mxu0 0
        %571 = vmatpush2.bf16.msra.mxu0 0
        %572 = vmatprep.mubr.bf16.mxu0 0
        %573 = vmatmul.mubr.bf16.gmra.mxu0 %v468
        %v574 = vpop.f32.mrf.mxu0
        %v575 = vadd.f32 %v490, %v574
        %v576 = vpop.f32.mrf.mxu0
        %v577 = vpop.f32.mrf.mxu0
        %v578 = vpop.f32.mrf.mxu0
        %579 = vdwg.mxu0
        %v580 = vmax.f32 %v575, 0.0
        %581 = vst [vmem:[%s322] sm:$0xff] %v580
        %s582 = sand.u32 %s185, 1
        %s583 = scalar_lea.sflag [#allocation4], %s582
        %s584 = sand.u32 %s185, 1
        %s585 = smul.addr %s584, 8
        %s586 = scalar_lea.vmem [#allocation8], %s585
        // Predicated region
        $region61: #{tpu_custom_call.1} parent=47 // pred_check
          %p587 = pneg %p195
        $region62: #{tpu_custom_call.1} parent=47 // pred_check_branch
          %589 = sbr.rel (%p587) target = $region64
        $region63: #{tpu_custom_call.1} parent=47 // pred_region
          %s591 = ssub.s32 128, 128
          %592 = vsyncadd %s583, %s591
          %s593 = smul.addr %s25, 128
          %s594 = scalar_lea.hbm %s7, %s593
          %s596 = sshll.u32 %s586, 4
          %s597 = int_to_ptr.vmem [resolvable:$true] %s596
          %599 = dma.vmem_to_hbm [thread:$0]  %s597, 128, %s594, %s583
        $region64: #{tpu_custom_call.1} parent=47 // pred_fallthru
          _
      $region48: #{tpu_custom_call.1} parent=5 // pred_fallthru
        _
      %p600 = scmp.le.s32.totalorder 2, %s20
      // Predicated region
      $region65: #{tpu_custom_call.1} parent=5 // pred_check
        %p601 = pneg %p600
      $region66: #{tpu_custom_call.1} parent=5 // pred_check_branch
        %603 = sbr.rel (%p601) target = $region68
      $region67: #{tpu_custom_call.1} parent=5 // pred_region
        %s604 = ssub.s32 %s20, 2
        // Predicated region
        $region69: #{tpu_custom_call.1} parent=67 // pred_check
          %p605 = pneg %p201
        $region70: #{tpu_custom_call.1} parent=67 // pred_check_branch
          %607 = sbr.rel (%p605) target = $region72
        $region71: #{tpu_custom_call.1} parent=67 // pred_region
          %s608 = sand.u32 %s186, 1
          %s609 = scalar_lea.sflag [#allocation4], %s608
          %s610 = sand.u32 %s186, 1
          %s611 = smul.addr %s610, 8
          %s612 = scalar_lea.vmem [#allocation8], %s611
          %613 = dma.done %s609, 128
        $region72: #{tpu_custom_call.1} parent=67 // pred_fallthru
          _
      $region68: #{tpu_custom_call.1} parent=5 // pred_fallthru
        _
    $region6: #{tpu_custom_call.1} parent=1 // loop_footer
      %s24 = sadd.s32 1, %s20
    $region7: #{tpu_custom_call.1} parent=1 // loop_footer_branch
      %19 = sbr.rel target = $region3
    $region8: #{tpu_custom_call.1} parent=1 // loop_exit
      _
    %614 = vsyncpa [#allocation3], 1
    %s615 = scalar_lea.sflag [#allocation3], 1
    %616 = vsyncpa %s615, 1
    %617 = vsyncpa [#allocation6], 1
    %618 = vsyncpa [#allocation4], 1
    %s619 = scalar_lea.sflag [#allocation4], 1
    %620 = vsyncpa %s619, 1

</llo_original>
